<compile_context>
chip_gen: v5e
topology: v5e:2x2
jax: 0.10.0
libtpu: 0.0.40
codegen_flags: <defaults>
</compile_context>

<pallas_src>
import functools

import jax
import jax.numpy as jnp
from jax.experimental import pallas as pl
from jax.experimental.pallas import tpu as pltpu

LANE = 128


def _swish_kernel(x_ref, o_ref, *, compute_dtype):
    x = x_ref[...].astype(compute_dtype)
    # Numerically stable sigmoid: z = exp(-|x|) never overflows.
    z = jnp.exp(-jnp.abs(x))                       # EUP
    r = 1.0 / (1.0 + z)
    sig = jnp.where(x >= 0, r, z * r)              # VPU select
    o_ref[...] = (x * sig).astype(o_ref.dtype)


def _choose_cols(n: int) -> int:
    """Widest lane-dense column count that divides n exactly (0 if ragged)."""
    for c in (8 * LANE, 4 * LANE, 2 * LANE, LANE):
        if n % c == 0:
            return c
    return 0


def swish(x: jax.Array, *, target_block_bytes: int = 2 * 1024 * 1024,
          donate: bool = False) -> jax.Array:
    """Elementwise x * sigmoid(x) (matches torch `x * torch.sigmoid(x)`)."""
    orig_shape = x.shape
    dtype = x.dtype
    n = x.size
    if n == 0:
        return x

    itemsize = jnp.dtype(dtype).itemsize

    cols = _choose_cols(n)
    pad = 0
    if cols == 0:
        # Rare ragged flat length (not a multiple of 128): pad to a lane row.
        # Only this fallback pays an extra pad/slice pass.
        cols = LANE
        pad = (-n) % cols

    x_flat = x.reshape(-1)
    if pad:
        x_flat = jnp.pad(x_flat, (0, pad))
    rows = x_flat.size // cols
    x2d = x_flat.reshape(rows, cols)

    # Row tile sized for ~target_block_bytes per block (multiple of 8 sublanes).
    tr = max(8, (target_block_bytes // (cols * itemsize)) // 8 * 8)
    if rows <= tr:
        if rows > 16:
            # Split medium tensors into >=2 blocks so v7x's two TCs both work.
            tr = max(8, ((rows + 1) // 2 + 7) // 8 * 8)
        else:
            tr = rows  # single full-dim block (always a legal block shape)
    grid = (pl.cdiv(rows, tr),)  # ragged last block handled by Pallas

    if dtype in (jnp.dtype(jnp.float32), jnp.dtype(jnp.bfloat16)):
        compute_dtype = dtype          # bf16 VPU/EUP on v6e/v7x; widened on v5e
    else:
        compute_dtype = jnp.float32

    out2d = pl.pallas_call(
        functools.partial(_swish_kernel, compute_dtype=compute_dtype),
        out_shape=jax.ShapeDtypeStruct((rows, cols), dtype),
        grid_spec=pltpu.PrefetchScalarGridSpec(
            num_scalar_prefetch=0,
            grid=grid,
            in_specs=[pl.BlockSpec((tr, cols), lambda i: (i, 0))],
            out_specs=pl.BlockSpec((tr, cols), lambda i: (i, 0)),
        ),
        compiler_params=pltpu.CompilerParams(
            dimension_semantics=("parallel",),
        ),
        # Caller may donate x to avoid a second full-size HBM allocation.
        input_output_aliases=({0: 0} if donate else {}),
    )(x2d)

    if pad:
        return out2d.reshape(-1)[:n].reshape(orig_shape)
    return out2d.reshape(orig_shape)


if __name__ == "__main__":
    key = jax.random.PRNGKey(0)
    # NCHW like a typical conv activation: batch=2, channels=4, 16x16 spatial.
    x = jax.random.normal(key, (2, 4, 16, 16), dtype=jnp.float32)

    y = swish(x)
    jax.block_until_ready(y)

    y_ref = x * jax.nn.sigmoid(x)
    assert y.shape == x.shape and y.dtype == x.dtype
    assert jnp.allclose(y, y_ref, atol=1e-6, rtol=1e-5)

    # Multi-block path (>= 2 grid blocks, both v7x cores busy).
    x2 = jax.random.normal(jax.random.PRNGKey(1), (8, 64, 32, 32),
                           dtype=jnp.float32)
    y2 = swish(x2)
    jax.block_until_ready(y2)
    assert jnp.allclose(y2, x2 * jax.nn.sigmoid(x2), atol=1e-6, rtol=1e-5)

    # Ragged last block (cdiv grid) path.
    x3 = jax.random.normal(jax.random.PRNGKey(2), (10, 4, 32, 32),
                           dtype=jnp.float32)
    y3 = swish(x3)
    jax.block_until_ready(y3)
    assert jnp.allclose(y3, x3 * jax.nn.sigmoid(x3), atol=1e-6, rtol=1e-5)

    print("KERNEL_OK")
</pallas_src>

<mosaic_0001>
module attributes {stable_mosaic.version = 11 : i64} {
  func.func @_swish_kernel(%arg0: i32, %arg1: memref<2x1024xf32, #tpu.memory_space<vmem>>, %arg2: memref<2x1024xf32, #tpu.memory_space<vmem>>) attributes {dimension_semantics = [#tpu.dimension_semantics<parallel>], iteration_bounds = array<i64: 1>, scalar_prefetch = 0 : i64, scratch_operands = 0 : i64, tpu.core_type = #tpu.core_type<tc>, window_params = [{transform_indices = @transform_0, window_bounds = array<i64: 2, 1024>}, {transform_indices = @transform_1, window_bounds = array<i64: 2, 1024>}]} {
    %c0 = arith.constant 0 : index
    %c0_0 = arith.constant 0 : index
    %0 = vector.load %arg1[%c0, %c0_0] : memref<2x1024xf32, #tpu.memory_space<vmem>>, vector<2x1024xf32>
    %1 = math.absf %0 : vector<2x1024xf32>
    %cst = arith.constant 0.000000e+00 : f32
    %2 = vector.broadcast %cst : f32 to vector<2x1024xf32>
    %3 = arith.subf %2, %1 : vector<2x1024xf32>
    %4 = math.exp %3 : vector<2x1024xf32>
    %cst_1 = arith.constant 1.000000e+00 : f32
    %5 = vector.broadcast %cst_1 : f32 to vector<2x1024xf32>
    %6 = arith.addf %5, %4 : vector<2x1024xf32>
    %cst_2 = arith.constant 1.000000e+00 : f32
    %7 = vector.broadcast %cst_2 : f32 to vector<2x1024xf32>
    %8 = arith.divf %7, %6 : vector<2x1024xf32>
    %cst_3 = arith.constant 0.000000e+00 : f32
    %9 = vector.broadcast %cst_3 : f32 to vector<2x1024xf32>
    %10 = arith.cmpf oge, %0, %9 : vector<2x1024xf32>
    %11 = arith.mulf %4, %8 : vector<2x1024xf32>
    %12 = arith.select %10, %8, %11 : vector<2x1024xi1>, vector<2x1024xf32>
    %13 = arith.mulf %0, %12 : vector<2x1024xf32>
    %c0_4 = arith.constant 0 : index
    %c0_5 = arith.constant 0 : index
    %14 = vector.load %arg2[%c0_4, %c0_5] : memref<2x1024xf32, #tpu.memory_space<vmem>>, vector<2x1024xf32>
    tpu.vector_store %arg2[%c0_4, %c0_5], %13 {strides = array<i32>} : memref<2x1024xf32, #tpu.memory_space<vmem>>, vector<2x1024xf32>,
    return
  }
  func.func @transform_0(%arg0: i32) -> (i32, i32) {
    %c0_i32 = arith.constant 0 : i32
    %c0_i32_0 = arith.constant 0 : i32
    return %arg0, %c0_i32 : i32, i32
  }
  func.func @transform_1(%arg0: i32) -> (i32, i32) {
    %c0_i32 = arith.constant 0 : i32
    %c0_i32_0 = arith.constant 0 : i32
    return %arg0, %c0_i32 : i32, i32
  }
}

</mosaic_0001>

<llo_original>
// kernel: tpu_custom_call.1
$region0: #{tpu_custom_call.1}
  #allocation0 [shape = 'u32[]', space=smem, size = 0x4, offset = 0x4, fixed_abs, tag = 'smem constant byte address 0x4 - core index']
  #allocation1 [shape = 'u32[72,128]{1,0:T(1,128)}', space=vmem, size = 0x9000, scoped, tag = 'internal scratch']
  %s0 = inlined_call_operand.hbm [shape: f32[2,1024], index: 0, kind: input, shape index: {}]
  %s1 = inlined_call_operand.hbm [shape: f32[2,1024], index: 1, kind: output, shape index: {}]
  %s2 = sld [smem:[#allocation0]]
  $region18: #{tpu_custom_call.1} parent=0
    _
  %s4 = ssub.s32 1, %s2
  %s5 = scalar_select 0, %s4, %s2
  $region1: #{tpu_custom_call.1} parent=0
    #allocation2 [shape = 'u8[8192]{0}', space=vmem, size = 0x2000, scoped, tag = 'input window, operand 0, single buffered']
    #allocation3 [shape = 's32[1]{0}', space=sflag, size = 0x4, scoped, tag = 'scoped memory for tpu_custom_call.1']
    #allocation4 [shape = 's32[1]{0}', space=sflag, size = 0x4, scoped, tag = 'scoped memory for tpu_custom_call.1']
    #allocation5 [shape = 'u8[8192]{0}', space=vmem, size = 0x2000, scoped, tag = 'output window, operand 0, single buffered']
    %6 = vsyncpa [#allocation3], 0
    %7 = vsyncpa [#allocation4], 0
    // Predicated region
    $region2: #{tpu_custom_call.1} parent=1 // pred_check
      _
    $region3: #{tpu_custom_call.1} parent=1 // pred_check_branch
      %9 = sbr.rel (0) target = $region5
    $region4: #{tpu_custom_call.1} parent=1 // pred_region
      %11 = vsyncadd [#allocation3], 0
      %s13 = sshll.u32 %s0, 4
      %s14 = int_to_ptr.hbm [resolvable:$true] %s13
      %s15 = sshll.u32 [#allocation2], 4
      %s16 = int_to_ptr.vmem [resolvable:$true] %s15
      %18 = dma.hbm_to_vmem [thread:$0]  %s14, 256, %s16, [#allocation3]
    $region5: #{tpu_custom_call.1} parent=1 // pred_fallthru
      _
    // Predicated region
    $region6: #{tpu_custom_call.1} parent=1 // pred_check
      _
    $region7: #{tpu_custom_call.1} parent=1 // pred_check_branch
      %20 = sbr.rel (0) target = $region9
    $region8: #{tpu_custom_call.1} parent=1 // pred_region
      %22 = dma.done [#allocation3], 256
    $region9: #{tpu_custom_call.1} parent=1 // pred_fallthru
      _
    %v23 = vld [vmem:[#allocation2] sm:$0xff]
    %v24 = vld [vmem:[#allocation2 + $0x8] sm:$0xff]
    %v25 = vand.u32 2147483647, %v23
    %v26 = vand.u32 2147483647, %v24
    %v27 = vsub.f32 0.0, %v25
    %v28 = vsub.f32 0.0, %v26
    %v29 = vmul.f32 %v27, 1.442695
    %v30 = vpow.pop %v29
    %v31 = vmul.f32 %v28, 1.442695
    %v32 = vpow.pop %v31
    %v33 = vadd.f32 %v30, 1.0
    %v34 = vadd.f32 %v32, 1.0
    %v35 = vrcp.pop %v33
    %v36 = vmul.f32 %v33, %v35
    %v37 = vsub.f32 1.0, %v36
    %v38 = vmul.f32 %v35, %v37
    %v39 = vadd.f32 %v35, %v38
    %vm40 = vweird.f32 %v33
    %vm41 = vweird.f32 %v35
    %vm42 = vmor %vm40, %vm41
    %v43 = vsel %vm42, %v35, %v39
    %v44 = vand.u32 2147483647, %v33
    %vm45 = vcmp.eq.f32.partialorder %v44, 8.507059e+37
    %v46 = vand.u32 %v33, 2147483648
    %v47 = vor.u32 1.1754944e-38, %v46
    %v48 = vsel %vm45, %v47, %v43
    %v49 = vmul.f32 1.0, %v48
    %v50 = vrcp.pop %v34
    %v51 = vmul.f32 %v34, %v50
    %v52 = vsub.f32 1.0, %v51
    %v53 = vmul.f32 %v50, %v52
    %v54 = vadd.f32 %v50, %v53
    %vm55 = vweird.f32 %v34
    %vm56 = vweird.f32 %v50
    %vm57 = vmor %vm55, %vm56
    %v58 = vsel %vm57, %v50, %v54
    %v59 = vand.u32 2147483647, %v34
    %vm60 = vcmp.eq.f32.partialorder %v59, 8.507059e+37
    %v61 = vand.u32 %v34, 2147483648
    %v62 = vor.u32 1.1754944e-38, %v61
    %v63 = vsel %vm60, %v62, %v58
    %v64 = vmul.f32 1.0, %v63
    %vm65 = vcmp.ge.f32.partialorder %v23, 0.0
    %vm66 = vcmp.ge.f32.partialorder %v24, 0.0
    %v67 = vmul.f32 %v30, %v49
    %v68 = vmul.f32 %v32, %v64
    %v69 = vsel %vm65, %v49, %v67
    %v70 = vsel %vm66, %v64, %v68
    %v71 = vmul.f32 %v23, %v69
    %v72 = vmul.f32 %v24, %v70
    %73 = vst [vmem:[#allocation5] sm:$0xff] %v71
    %74 = vst [vmem:[#allocation5 + $0x8] sm:$0xff] %v72
    // Predicated region
    $region10: #{tpu_custom_call.1} parent=1 // pred_check
      _
    $region11: #{tpu_custom_call.1} parent=1 // pred_check_branch
      %76 = sbr.rel (0) target = $region13
    $region12: #{tpu_custom_call.1} parent=1 // pred_region
      %78 = vsyncadd [#allocation4], 0
      %s80 = sshll.u32 [#allocation5], 4
      %s81 = int_to_ptr.vmem [resolvable:$true] %s80
      %s82 = sshll.u32 %s1, 4
      %s83 = int_to_ptr.hbm [resolvable:$true] %s82
      %85 = dma.vmem_to_hbm [thread:$0]  %s81, 256, %s83, [#allocation4]
    $region13: #{tpu_custom_call.1} parent=1 // pred_fallthru
      _
    // Predicated region
    $region14: #{tpu_custom_call.1} parent=1 // pred_check
      _
    $region15: #{tpu_custom_call.1} parent=1 // pred_check_branch
      %87 = sbr.rel (0) target = $region17
    $region16: #{tpu_custom_call.1} parent=1 // pred_region
      %89 = dma.done [#allocation4], 256
    $region17: #{tpu_custom_call.1} parent=1 // pred_fallthru
      _
    %90 = vsyncpa [#allocation3], 1
    %91 = vsyncpa [#allocation4], 1

</llo_original>
